<compile_context>
chip_gen: v7x
topology: tpu7x:2x2x1
jax: 0.10.0
libtpu: 0.0.40
codegen_flags: <defaults>
</compile_context>

<pallas_src>
import functools

import jax
import jax.numpy as jnp
from jax import lax
from jax.experimental import pallas as pl
from jax.experimental.pallas import tpu as pltpu

_SQRT_HALF = 0.7071067811865476

# row-slab layout (rows of width L each):
#   0.. 4  gated1: wg, b1, w2_row, bf1, wf2_row
#   5.. 7  mlp1  : w1, b1, w2_row
#   8..12  gated2: wg, b1, w2_row, bf1, wf2_row
#  13..15  mlp2  : w1, b1, w2_row
#  16      scalar biases: [b2_g1, bf2_g1, b2_m1, b2_g2, bf2_g2, b2_m2, 0...]
_G1_R, _M1_R, _G2_R, _M2_R, _SCAL_R = 0, 5, 8, 13, 16
_G1_S, _M1_S, _G2_S, _M2_S = 0, 2, 3, 5


def _round_up(x, m):
    return (x + m - 1) // m * m


def _gelu(x):
    # exact GELU, matches torch.nn.GELU(approximate='none')
    return 0.5 * x * (1.0 + lax.erf(x * _SQRT_HALF))


def _sigmoid(x):
    return 1.0 / (1.0 + jnp.exp(-x))


# ---------------------------------------------------------------------------
# Kernel
# ---------------------------------------------------------------------------
def weightstream_kernel(x1_ref, x2_ref, g_ref, w_ref, r_ref, out_ref, *, N, bpb):
    L = r_ref.shape[1]
    sc = r_ref[_SCAL_R:_SCAL_R + 1, :]          # (1, L) scalar-bias row

    def gated(x, g, wcol, rb, sb):
        # parameters loaded at point of use; all slices are static & 128-lane
        # aligned (padded columns of the slabs are zero, so the math is exact).
        Wx = w_ref[:, wcol * L:(wcol + 1) * L]                  # (C, L)
        wg = r_ref[rb + 0:rb + 1, :]                            # (1, L)
        b1 = r_ref[rb + 1:rb + 2, :]
        w2 = r_ref[rb + 2:rb + 3, :]
        # cat([x, g], -1) @ W1 + b1  ==  x @ W1[:C] + g * W1[C:] + b1   (MXU)
        z = _gelu(jnp.dot(x, Wx, preferred_element_type=jnp.float32)
                  + g * wg + b1)
        # Linear(C+1, 1): output-dim-1 -> VPU multiply + lane reduction
        alphas = _sigmoid(jnp.sum(z * w2, axis=-1, keepdims=True)
                          + sc[:, sb:sb + 1])
        h = x * (alphas + 1.0)
        Wf1 = w_ref[:, (wcol + 1) * L:(wcol + 2) * L]           # (C, L)
        bf1 = r_ref[rb + 3:rb + 4, :]
        wf2 = r_ref[rb + 4:rb + 5, :]
        f = _gelu(jnp.dot(h, Wf1, preferred_element_type=jnp.float32) + bf1)
        # Linear(C, 1) -> VPU reduce
        return jnp.sum(f * wf2, axis=-1, keepdims=True) + sc[:, sb + 1:sb + 2]

    def mlp(g, rb, sb):
        w1 = r_ref[rb + 0:rb + 1, :]
        b1 = r_ref[rb + 1:rb + 2, :]
        w2 = r_ref[rb + 2:rb + 3, :]
        # Linear(1, C) as a broadcast; Linear(C, 1) as a VPU reduce
        h = _gelu(g * w1 + b1)
        return jnp.sum(h * w2, axis=-1, keepdims=True) + sc[:, sb:sb + 1]

    x1 = x1_ref[...]                             # (bpb*N, C)
    x2 = x2_ref[...]
    g = g_ref[...]                               # (bpb*N, 1)

    g = gated(x1, g, wcol=0, rb=_G1_R, sb=_G1_S)
    g = mlp(g, rb=_M1_R, sb=_M1_S)
    g = gated(x2, g, wcol=2, rb=_G2_R, sb=_G2_S)
    g = mlp(g, rb=_M2_R, sb=_M2_S)

    # affinity = g @ g^T per batch: one sublane->lane relayout, then pure
    # VPU broadcast multiplies (no K=1 MXU passes, lane-dense within N).
    g_row = g.reshape(1, bpb * N)                # (1, bpb*N)
    for bi in range(bpb):                        # static unroll
        out_ref[bi] = (g[bi * N:(bi + 1) * N, :]
                       * g_row[:, bi * N:(bi + 1) * N])


# ---------------------------------------------------------------------------
# Wrapper
# ---------------------------------------------------------------------------
def _choose_bpb(B, N):
    """Batches per grid step: whole batches, ~256 rows of M, (8,_) legal."""
    target = max(1, 256 // max(N, 1))
    for cand in range(min(B, target), 0, -1):
        if B % cand:
            continue
        if (cand * N) % 8 == 0 or cand == B:
            return cand
    return B


def _vmem_limit_bytes(tm, C, L, bpb, N, rrows):
    dbl = 2  # double-buffered pipeline windows
    need = dbl * (2 * tm * C + tm + C * 4 * L + rrows * L + bpb * N * N) * 4
    return int(min(max(2 * need + (4 << 20), 16 << 20), 64 << 20))


def weightstream(x1, x2, g, wslab, rslab):
    B, N, C = x1.shape
    L = rslab.shape[1]
    rrows = rslab.shape[0]
    bpb = _choose_bpb(B, N)
    tm = bpb * N
    M = B * N

    # fold B into the matmul M dimension
    x1f = x1.reshape(M, C)
    x2f = x2.reshape(M, C)
    gf = g.reshape(M, 1)

    kernel = functools.partial(weightstream_kernel, N=N, bpb=bpb)

    in_specs = [
        pl.BlockSpec((tm, C), lambda i: (i, 0)),
        pl.BlockSpec((tm, C), lambda i: (i, 0)),
        pl.BlockSpec((tm, 1), lambda i: (i, 0)),
        pl.BlockSpec(wslab.shape, lambda i: (0, 0)),   # packed weight slab
        pl.BlockSpec(rslab.shape, lambda i: (0, 0)),   # packed row/bias slab
    ]

    return pl.pallas_call(
        kernel,
        out_shape=jax.ShapeDtypeStruct((B, N, N), jnp.float32),
        grid_spec=pltpu.PrefetchScalarGridSpec(
            num_scalar_prefetch=0,
            grid=(B // bpb,),
            in_specs=in_specs,
            out_specs=pl.BlockSpec((bpb, N, N), lambda i: (i, 0, 0)),
        ),
        compiler_params=pltpu.CompilerParams(
            dimension_semantics=("parallel",),
            vmem_limit_bytes=_vmem_limit_bytes(tm, C, L, bpb, N, rrows),
        ),
    )(x1f, x2f, gf, wslab, rslab)


# ---------------------------------------------------------------------------
# Deterministic parameter init (shapes dictated by the module's __init__).
# Weights stored already transposed to (in, out); biases as (1, out).
# ---------------------------------------------------------------------------
def init_params(key, C):
    def lin(k, fi, fo):
        kw, kb = jax.random.split(k)
        W = jax.random.normal(kw, (fi, fo), jnp.float32) / jnp.sqrt(float(fi))
        b = jax.random.normal(kb, (1, fo), jnp.float32) * 0.02
        return W, b

    def gated(k):
        k1, k2, k3, k4 = jax.random.split(k, 4)
        W1, b1 = lin(k1, C + 1, C + 1)      # gated_mlp Linear(C+1, C+1)
        W2, b2 = lin(k2, C + 1, 1)          # gated_mlp Linear(C+1, 1)
        Wf1, bf1 = lin(k3, C, C)            # fuse Linear(C, C)
        Wf2, bf2 = lin(k4, C, 1)            # fuse Linear(C, 1)
        return [W1[:C], W1[C:C + 1], b1, W2, b2, Wf1, bf1, Wf2, bf2]

    def mlp(k):
        k1, k2 = jax.random.split(k, 2)
        W1, b1 = lin(k1, 1, C)              # Mlp fc1 Linear(1, C)
        W2, b2 = lin(k2, C, 1)              # Mlp fc2 Linear(C, 1)
        return [W1, b1, W2, b2]

    kg1, km1, kg2, km2 = jax.random.split(key, 4)
    return gated(kg1) + mlp(km1) + gated(kg2) + mlp(km2)


# ---------------------------------------------------------------------------
# Pack the 26 logical parameters into two lane-padded VMEM slabs.
# ---------------------------------------------------------------------------
def pack_params(params, C):
    L = _round_up(C + 1, 128)
    g1, m1, g2, m2 = params[0:9], params[9:13], params[13:22], params[22:26]

    def padcols(a):
        return jnp.pad(a, ((0, 0), (0, L - a.shape[1])))

    # weight slab (C, 4L): [Wx1 | Wf1_1 | Wx2 | Wf1_2], zero-padded columns
    wslab = jnp.concatenate(
        [padcols(g1[0]), padcols(g1[5]), padcols(g2[0]), padcols(g2[5])],
        axis=1)

    rows, scal = [], []

    def add_gated(gp):
        _, wg, b1, W2, b2, _, bf1, Wf2, bf2 = gp
        rows.extend([padcols(wg), padcols(b1), padcols(W2.T),
                     padcols(bf1), padcols(Wf2.T)])
        scal.extend([b2[0, 0], bf2[0, 0]])

    def add_mlp(mp):
        W1, b1, W2, b2 = mp
        rows.extend([padcols(W1), padcols(b1), padcols(W2.T)])
        scal.append(b2[0, 0])

    add_gated(g1)
    add_mlp(m1)
    add_gated(g2)
    add_mlp(m2)

    scal_row = jnp.zeros((1, L), jnp.float32).at[0, :len(scal)].set(
        jnp.stack(scal))
    rows.append(scal_row)

    rslab = jnp.concatenate(rows, axis=0)              # (17, L)
    rslab = jnp.pad(rslab, ((0, (-rslab.shape[0]) % 8), (0, 0)))  # (24, L)
    return wslab, rslab


# ---------------------------------------------------------------------------
# Pure-JAX reference (same math, batched) for validation
# ---------------------------------------------------------------------------
def reference(x1, x2, g, params):
    g1p, m1p, g2p, m2p = params[0:9], params[9:13], params[13:22], params[22:26]

    def gated_ref(x, gg, prm):
        Wx, wg, b1, W2, b2, Wf1, bf1, Wf2, bf2 = prm
        z = _gelu(x @ Wx + gg * wg + b1)
        a = _sigmoid(z @ W2 + b2)
        h = x * (a + 1.0)
        f = _gelu(h @ Wf1 + bf1)
        return f @ Wf2 + bf2

    def mlp_ref(gg, prm):
        W1, b1, W2, b2 = prm
        return _gelu(gg * W1 + b1) @ W2 + b2

    gg = gated_ref(x1, g, g1p)
    gg = mlp_ref(gg, m1p)
    gg = gated_ref(x2, gg, g2p)
    gg = mlp_ref(gg, m2p)
    return jnp.einsum('bni,bmi->bnm', gg, gg)


if __name__ == "__main__":
    key = jax.random.PRNGKey(0)
    B, N, C = 2, 8, 32   # batch=2, seq=8, in_features=32
    kx1, kx2, kg, kp = jax.random.split(key, 4)
    x1 = jax.random.normal(kx1, (B, N, C), jnp.float32)   # input_features[0]
    x2 = jax.random.normal(kx2, (B, N, C), jnp.float32)   # input_features[1]
    g = jax.random.normal(kg, (B, N, 1), jnp.float32)     # gating_features
    params = init_params(kp, C)
    wslab, rslab = pack_params(params, C)

    out = weightstream(x1, x2, g, wslab, rslab)
    out = jax.block_until_ready(out)

    ref = reference(x1, x2, g, params)
    assert out.shape == (B, N, N), out.shape
    assert jnp.allclose(out, ref, atol=1e-4, rtol=1e-4), float(
        jnp.max(jnp.abs(out - ref)))
    print("KERNEL_OK")
</pallas_src>

<mosaic_0001>
module attributes {stable_mosaic.version = 11 : i64} {
  func.func @weightstream_kernel(%arg0: i32, %arg1: memref<16x32xf32, #tpu.memory_space<vmem>>, %arg2: memref<16x32xf32, #tpu.memory_space<vmem>>, %arg3: memref<16x1xf32, #tpu.memory_space<vmem>>, %arg4: memref<32x512xf32, #tpu.memory_space<vmem>>, %arg5: memref<24x128xf32, #tpu.memory_space<vmem>>, %arg6: memref<2x8x8xf32, #tpu.memory_space<vmem>>) attributes {dimension_semantics = [#tpu.dimension_semantics<parallel>], iteration_bounds = array<i64: 1>, scalar_prefetch = 0 : i64, scratch_operands = 0 : i64, tpu.core_type = #tpu.core_type<tc>, window_params = [{transform_indices = @transform_0, window_bounds = array<i64: 16, 32>}, {transform_indices = @transform_1, window_bounds = array<i64: 16, 32>}, {transform_indices = @transform_2, window_bounds = array<i64: 16, 1>}, {pipeline_mode = #tpu.pipeline_mode<synchronous>, transform_indices = @transform_3, window_bounds = array<i64: 32, 512>}, {pipeline_mode = #tpu.pipeline_mode<synchronous>, transform_indices = @transform_4, window_bounds = array<i64: 24, 128>}, {transform_indices = @transform_5, window_bounds = array<i64: 2, 8, 8>}]} {
    %c16 = arith.constant 16 : index
    %c0 = arith.constant 0 : index
    %0 = vector.load %arg5[%c16, %c0] : memref<24x128xf32, #tpu.memory_space<vmem>>, vector<1x128xf32>
    %c0_0 = arith.constant 0 : index
    %c0_1 = arith.constant 0 : index
    %1 = vector.load %arg1[%c0_0, %c0_1] : memref<16x32xf32, #tpu.memory_space<vmem>>, vector<16x32xf32>
    %c0_2 = arith.constant 0 : index
    %c0_3 = arith.constant 0 : index
    %2 = vector.load %arg2[%c0_2, %c0_3] : memref<16x32xf32, #tpu.memory_space<vmem>>, vector<16x32xf32>
    %c0_4 = arith.constant 0 : index
    %c0_5 = arith.constant 0 : index
    %3 = vector.load %arg3[%c0_4, %c0_5] : memref<16x1xf32, #tpu.memory_space<vmem>>, vector<16x1xf32>
    %c0_6 = arith.constant 0 : index
    %c0_7 = arith.constant 0 : index
    %4 = vector.load %arg4[%c0_6, %c0_7] : memref<32x512xf32, #tpu.memory_space<vmem>>, vector<32x128xf32>
    %c0_8 = arith.constant 0 : index
    %c0_9 = arith.constant 0 : index
    %5 = vector.load %arg5[%c0_8, %c0_9] : memref<24x128xf32, #tpu.memory_space<vmem>>, vector<1x128xf32>
    %c1 = arith.constant 1 : index
    %c0_10 = arith.constant 0 : index
    %6 = vector.load %arg5[%c1, %c0_10] : memref<24x128xf32, #tpu.memory_space<vmem>>, vector<1x128xf32>
    %c2 = arith.constant 2 : index
    %c0_11 = arith.constant 0 : index
    %7 = vector.load %arg5[%c2, %c0_11] : memref<24x128xf32, #tpu.memory_space<vmem>>, vector<1x128xf32>
    %cst = arith.constant dense<0.000000e+00> : vector<16x128xf32>
    %8 = tpu.matmul %1, %4, %cst {dimension_numbers = #tpu.dot_dimension_numbers<[1], [0], [0], [1], [0, 0, 1, 1], [], []>} : vector<16x32xf32>, vector<32x128xf32>, vector<16x128xf32> -> vector<16x128xf32>
    %9 = vector.broadcast %3 : vector<16x1xf32> to vector<16x128xf32>
    %10 = vector.broadcast %5 : vector<1x128xf32> to vector<16x128xf32>
    %11 = arith.mulf %9, %10 : vector<16x128xf32>
    %12 = arith.addf %8, %11 : vector<16x128xf32>
    %13 = vector.broadcast %6 : vector<1x128xf32> to vector<16x128xf32>
    %14 = arith.addf %12, %13 : vector<16x128xf32>
    %cst_12 = arith.constant 5.000000e-01 : f32
    %15 = vector.broadcast %cst_12 : f32 to vector<16x128xf32>
    %16 = arith.mulf %15, %14 : vector<16x128xf32>
    %cst_13 = arith.constant 0.707106769 : f32
    %17 = vector.broadcast %cst_13 : f32 to vector<16x128xf32>
    %18 = arith.mulf %14, %17 : vector<16x128xf32>
    %19 = math.erf %18 : vector<16x128xf32>
    %cst_14 = arith.constant 1.000000e+00 : f32
    %20 = vector.broadcast %cst_14 : f32 to vector<16x128xf32>
    %21 = arith.addf %20, %19 : vector<16x128xf32>
    %22 = arith.mulf %16, %21 : vector<16x128xf32>
    %23 = vector.broadcast %7 : vector<1x128xf32> to vector<16x128xf32>
    %24 = arith.mulf %22, %23 : vector<16x128xf32>
    %cst_15 = arith.constant dense<0.000000e+00> : vector<16xf32>
    %25 = vector.multi_reduction <add>, %24, %cst_15 [1] : vector<16x128xf32> to vector<16xf32>
    %26 = vector.shape_cast %25 : vector<16xf32> to vector<16x1xf32>
    %27 = vector.extract_strided_slice %0 {offsets = [0, 0], sizes = [1, 1], strides = [1, 1]} : vector<1x128xf32> to vector<1x1xf32>
    %28 = vector.broadcast %27 : vector<1x1xf32> to vector<16x1xf32>
    %29 = arith.addf %26, %28 : vector<16x1xf32>
    %cst_16 = arith.constant 0.000000e+00 : f32
    %30 = vector.broadcast %cst_16 : f32 to vector<16x1xf32>
    %31 = arith.subf %30, %29 : vector<16x1xf32>
    %32 = math.exp %31 : vector<16x1xf32>
    %cst_17 = arith.constant 1.000000e+00 : f32
    %33 = vector.broadcast %cst_17 : f32 to vector<16x1xf32>
    %34 = arith.addf %33, %32 : vector<16x1xf32>
    %cst_18 = arith.constant 1.000000e+00 : f32
    %35 = vector.broadcast %cst_18 : f32 to vector<16x1xf32>
    %36 = arith.divf %35, %34 : vector<16x1xf32>
    %cst_19 = arith.constant 1.000000e+00 : f32
    %37 = vector.broadcast %cst_19 : f32 to vector<16x1xf32>
    %38 = arith.addf %36, %37 : vector<16x1xf32>
    %39 = vector.broadcast %38 : vector<16x1xf32> to vector<16x32xf32>
    %40 = arith.mulf %1, %39 : vector<16x32xf32>
    %c0_20 = arith.constant 0 : index
    %c128 = arith.constant 128 : index
    %41 = vector.load %arg4[%c0_20, %c128] : memref<32x512xf32, #tpu.memory_space<vmem>>, vector<32x128xf32>
    %c3 = arith.constant 3 : index
    %c0_21 = arith.constant 0 : index
    %42 = vector.load %arg5[%c3, %c0_21] : memref<24x128xf32, #tpu.memory_space<vmem>>, vector<1x128xf32>
    %c4 = arith.constant 4 : index
    %c0_22 = arith.constant 0 : index
    %43 = vector.load %arg5[%c4, %c0_22] : memref<24x128xf32, #tpu.memory_space<vmem>>, vector<1x128xf32>
    %cst_23 = arith.constant dense<0.000000e+00> : vector<16x128xf32>
    %44 = tpu.matmul %40, %41, %cst_23 {dimension_numbers = #tpu.dot_dimension_numbers<[1], [0], [0], [1], [0, 0, 1, 1], [], []>} : vector<16x32xf32>, vector<32x128xf32>, vector<16x128xf32> -> vector<16x128xf32>
    %45 = vector.broadcast %42 : vector<1x128xf32> to vector<16x128xf32>
    %46 = arith.addf %44, %45 : vector<16x128xf32>
    %cst_24 = arith.constant 5.000000e-01 : f32
    %47 = vector.broadcast %cst_24 : f32 to vector<16x128xf32>
    %48 = arith.mulf %47, %46 : vector<16x128xf32>
    %cst_25 = arith.constant 0.707106769 : f32
    %49 = vector.broadcast %cst_25 : f32 to vector<16x128xf32>
    %50 = arith.mulf %46, %49 : vector<16x128xf32>
    %51 = math.erf %50 : vector<16x128xf32>
    %cst_26 = arith.constant 1.000000e+00 : f32
    %52 = vector.broadcast %cst_26 : f32 to vector<16x128xf32>
    %53 = arith.addf %52, %51 : vector<16x128xf32>
    %54 = arith.mulf %48, %53 : vector<16x128xf32>
    %55 = vector.broadcast %43 : vector<1x128xf32> to vector<16x128xf32>
    %56 = arith.mulf %54, %55 : vector<16x128xf32>
    %cst_27 = arith.constant dense<0.000000e+00> : vector<16xf32>
    %57 = vector.multi_reduction <add>, %56, %cst_27 [1] : vector<16x128xf32> to vector<16xf32>
    %58 = vector.shape_cast %57 : vector<16xf32> to vector<16x1xf32>
    %59 = vector.extract_strided_slice %0 {offsets = [0, 1], sizes = [1, 1], strides = [1, 1]} : vector<1x128xf32> to vector<1x1xf32>
    %60 = vector.broadcast %59 : vector<1x1xf32> to vector<16x1xf32>
    %61 = arith.addf %58, %60 : vector<16x1xf32>
    %c5 = arith.constant 5 : index
    %c0_28 = arith.constant 0 : index
    %62 = vector.load %arg5[%c5, %c0_28] : memref<24x128xf32, #tpu.memory_space<vmem>>, vector<1x128xf32>
    %c6 = arith.constant 6 : index
    %c0_29 = arith.constant 0 : index
    %63 = vector.load %arg5[%c6, %c0_29] : memref<24x128xf32, #tpu.memory_space<vmem>>, vector<1x128xf32>
    %c7 = arith.constant 7 : index
    %c0_30 = arith.constant 0 : index
    %64 = vector.load %arg5[%c7, %c0_30] : memref<24x128xf32, #tpu.memory_space<vmem>>, vector<1x128xf32>
    %65 = vector.broadcast %61 : vector<16x1xf32> to vector<16x128xf32>
    %66 = vector.broadcast %62 : vector<1x128xf32> to vector<16x128xf32>
    %67 = arith.mulf %65, %66 : vector<16x128xf32>
    %68 = vector.broadcast %63 : vector<1x128xf32> to vector<16x128xf32>
    %69 = arith.addf %67, %68 : vector<16x128xf32>
    %cst_31 = arith.constant 5.000000e-01 : f32
    %70 = vector.broadcast %cst_31 : f32 to vector<16x128xf32>
    %71 = arith.mulf %70, %69 : vector<16x128xf32>
    %cst_32 = arith.constant 0.707106769 : f32
    %72 = vector.broadcast %cst_32 : f32 to vector<16x128xf32>
    %73 = arith.mulf %69, %72 : vector<16x128xf32>
    %74 = math.erf %73 : vector<16x128xf32>
    %cst_33 = arith.constant 1.000000e+00 : f32
    %75 = vector.broadcast %cst_33 : f32 to vector<16x128xf32>
    %76 = arith.addf %75, %74 : vector<16x128xf32>
    %77 = arith.mulf %71, %76 : vector<16x128xf32>
    %78 = vector.broadcast %64 : vector<1x128xf32> to vector<16x128xf32>
    %79 = arith.mulf %77, %78 : vector<16x128xf32>
    %cst_34 = arith.constant dense<0.000000e+00> : vector<16xf32>
    %80 = vector.multi_reduction <add>, %79, %cst_34 [1] : vector<16x128xf32> to vector<16xf32>
    %81 = vector.shape_cast %80 : vector<16xf32> to vector<16x1xf32>
    %82 = vector.extract_strided_slice %0 {offsets = [0, 2], sizes = [1, 1], strides = [1, 1]} : vector<1x128xf32> to vector<1x1xf32>
    %83 = vector.broadcast %82 : vector<1x1xf32> to vector<16x1xf32>
    %84 = arith.addf %81, %83 : vector<16x1xf32>
    %c0_35 = arith.constant 0 : index
    %c256 = arith.constant 256 : index
    %85 = vector.load %arg4[%c0_35, %c256] : memref<32x512xf32, #tpu.memory_space<vmem>>, vector<32x128xf32>
    %c8 = arith.constant 8 : index
    %c0_36 = arith.constant 0 : index
    %86 = vector.load %arg5[%c8, %c0_36] : memref<24x128xf32, #tpu.memory_space<vmem>>, vector<1x128xf32>
    %c9 = arith.constant 9 : index
    %c0_37 = arith.constant 0 : index
    %87 = vector.load %arg5[%c9, %c0_37] : memref<24x128xf32, #tpu.memory_space<vmem>>, vector<1x128xf32>
    %c10 = arith.constant 10 : index
    %c0_38 = arith.constant 0 : index
    %88 = vector.load %arg5[%c10, %c0_38] : memref<24x128xf32, #tpu.memory_space<vmem>>, vector<1x128xf32>
    %cst_39 = arith.constant dense<0.000000e+00> : vector<16x128xf32>
    %89 = tpu.matmul %2, %85, %cst_39 {dimension_numbers = #tpu.dot_dimension_numbers<[1], [0], [0], [1], [0, 0, 1, 1], [], []>} : vector<16x32xf32>, vector<32x128xf32>, vector<16x128xf32> -> vector<16x128xf32>
    %90 = vector.broadcast %84 : vector<16x1xf32> to vector<16x128xf32>
    %91 = vector.broadcast %86 : vector<1x128xf32> to vector<16x128xf32>
    %92 = arith.mulf %90, %91 : vector<16x128xf32>
    %93 = arith.addf %89, %92 : vector<16x128xf32>
    %94 = vector.broadcast %87 : vector<1x128xf32> to vector<16x128xf32>
    %95 = arith.addf %93, %94 : vector<16x128xf32>
    %cst_40 = arith.constant 5.000000e-01 : f32
    %96 = vector.broadcast %cst_40 : f32 to vector<16x128xf32>
    %97 = arith.mulf %96, %95 : vector<16x128xf32>
    %cst_41 = arith.constant 0.707106769 : f32
    %98 = vector.broadcast %cst_41 : f32 to vector<16x128xf32>
    %99 = arith.mulf %95, %98 : vector<16x128xf32>
    %100 = math.erf %99 : vector<16x128xf32>
    %cst_42 = arith.constant 1.000000e+00 : f32
    %101 = vector.broadcast %cst_42 : f32 to vector<16x128xf32>
    %102 = arith.addf %101, %100 : vector<16x128xf32>
    %103 = arith.mulf %97, %102 : vector<16x128xf32>
    %104 = vector.broadcast %88 : vector<1x128xf32> to vector<16x128xf32>
    %105 = arith.mulf %103, %104 : vector<16x128xf32>
    %cst_43 = arith.constant dense<0.000000e+00> : vector<16xf32>
    %106 = vector.multi_reduction <add>, %105, %cst_43 [1] : vector<16x128xf32> to vector<16xf32>
    %107 = vector.shape_cast %106 : vector<16xf32> to vector<16x1xf32>
    %108 = vector.extract_strided_slice %0 {offsets = [0, 3], sizes = [1, 1], strides = [1, 1]} : vector<1x128xf32> to vector<1x1xf32>
    %109 = vector.broadcast %108 : vector<1x1xf32> to vector<16x1xf32>
    %110 = arith.addf %107, %109 : vector<16x1xf32>
    %cst_44 = arith.constant 0.000000e+00 : f32
    %111 = vector.broadcast %cst_44 : f32 to vector<16x1xf32>
    %112 = arith.subf %111, %110 : vector<16x1xf32>
    %113 = math.exp %112 : vector<16x1xf32>
    %cst_45 = arith.constant 1.000000e+00 : f32
    %114 = vector.broadcast %cst_45 : f32 to vector<16x1xf32>
    %115 = arith.addf %114, %113 : vector<16x1xf32>
    %cst_46 = arith.constant 1.000000e+00 : f32
    %116 = vector.broadcast %cst_46 : f32 to vector<16x1xf32>
    %117 = arith.divf %116, %115 : vector<16x1xf32>
    %cst_47 = arith.constant 1.000000e+00 : f32
    %118 = vector.broadcast %cst_47 : f32 to vector<16x1xf32>
    %119 = arith.addf %117, %118 : vector<16x1xf32>
    %120 = vector.broadcast %119 : vector<16x1xf32> to vector<16x32xf32>
    %121 = arith.mulf %2, %120 : vector<16x32xf32>
    %c0_48 = arith.constant 0 : index
    %c384 = arith.constant 384 : index
    %122 = vector.load %arg4[%c0_48, %c384] : memref<32x512xf32, #tpu.memory_space<vmem>>, vector<32x128xf32>
    %c11 = arith.constant 11 : index
    %c0_49 = arith.constant 0 : index
    %123 = vector.load %arg5[%c11, %c0_49] : memref<24x128xf32, #tpu.memory_space<vmem>>, vector<1x128xf32>
    %c12 = arith.constant 12 : index
    %c0_50 = arith.constant 0 : index
    %124 = vector.load %arg5[%c12, %c0_50] : memref<24x128xf32, #tpu.memory_space<vmem>>, vector<1x128xf32>
    %cst_51 = arith.constant dense<0.000000e+00> : vector<16x128xf32>
    %125 = tpu.matmul %121, %122, %cst_51 {dimension_numbers = #tpu.dot_dimension_numbers<[1], [0], [0], [1], [0, 0, 1, 1], [], []>} : vector<16x32xf32>, vector<32x128xf32>, vector<16x128xf32> -> vector<16x128xf32>
    %126 = vector.broadcast %123 : vector<1x128xf32> to vector<16x128xf32>
    %127 = arith.addf %125, %126 : vector<16x128xf32>
    %cst_52 = arith.constant 5.000000e-01 : f32
    %128 = vector.broadcast %cst_52 : f32 to vector<16x128xf32>
    %129 = arith.mulf %128, %127 : vector<16x128xf32>
    %cst_53 = arith.constant 0.707106769 : f32
    %130 = vector.broadcast %cst_53 : f32 to vector<16x128xf32>
    %131 = arith.mulf %127, %130 : vector<16x128xf32>
    %132 = math.erf %131 : vector<16x128xf32>
    %cst_54 = arith.constant 1.000000e+00 : f32
    %133 = vector.broadcast %cst_54 : f32 to vector<16x128xf32>
    %134 = arith.addf %133, %132 : vector<16x128xf32>
    %135 = arith.mulf %129, %134 : vector<16x128xf32>
    %136 = vector.broadcast %124 : vector<1x128xf32> to vector<16x128xf32>
    %137 = arith.mulf %135, %136 : vector<16x128xf32>
    %cst_55 = arith.constant dense<0.000000e+00> : vector<16xf32>
    %138 = vector.multi_reduction <add>, %137, %cst_55 [1] : vector<16x128xf32> to vector<16xf32>
    %139 = vector.shape_cast %138 : vector<16xf32> to vector<16x1xf32>
    %140 = vector.extract_strided_slice %0 {offsets = [0, 4], sizes = [1, 1], strides = [1, 1]} : vector<1x128xf32> to vector<1x1xf32>
    %141 = vector.broadcast %140 : vector<1x1xf32> to vector<16x1xf32>
    %142 = arith.addf %139, %141 : vector<16x1xf32>
    %c13 = arith.constant 13 : index
    %c0_56 = arith.constant 0 : index
    %143 = vector.load %arg5[%c13, %c0_56] : memref<24x128xf32, #tpu.memory_space<vmem>>, vector<1x128xf32>
    %c14 = arith.constant 14 : index
    %c0_57 = arith.constant 0 : index
    %144 = vector.load %arg5[%c14, %c0_57] : memref<24x128xf32, #tpu.memory_space<vmem>>, vector<1x128xf32>
    %c15 = arith.constant 15 : index
    %c0_58 = arith.constant 0 : index
    %145 = vector.load %arg5[%c15, %c0_58] : memref<24x128xf32, #tpu.memory_space<vmem>>, vector<1x128xf32>
    %146 = vector.broadcast %142 : vector<16x1xf32> to vector<16x128xf32>
    %147 = vector.broadcast %143 : vector<1x128xf32> to vector<16x128xf32>
    %148 = arith.mulf %146, %147 : vector<16x128xf32>
    %149 = vector.broadcast %144 : vector<1x128xf32> to vector<16x128xf32>
    %150 = arith.addf %148, %149 : vector<16x128xf32>
    %cst_59 = arith.constant 5.000000e-01 : f32
    %151 = vector.broadcast %cst_59 : f32 to vector<16x128xf32>
    %152 = arith.mulf %151, %150 : vector<16x128xf32>
    %cst_60 = arith.constant 0.707106769 : f32
    %153 = vector.broadcast %cst_60 : f32 to vector<16x128xf32>
    %154 = arith.mulf %150, %153 : vector<16x128xf32>
    %155 = math.erf %154 : vector<16x128xf32>
    %cst_61 = arith.constant 1.000000e+00 : f32
    %156 = vector.broadcast %cst_61 : f32 to vector<16x128xf32>
    %157 = arith.addf %156, %155 : vector<16x128xf32>
    %158 = arith.mulf %152, %157 : vector<16x128xf32>
    %159 = vector.broadcast %145 : vector<1x128xf32> to vector<16x128xf32>
    %160 = arith.mulf %158, %159 : vector<16x128xf32>
    %cst_62 = arith.constant dense<0.000000e+00> : vector<16xf32>
    %161 = vector.multi_reduction <add>, %160, %cst_62 [1] : vector<16x128xf32> to vector<16xf32>
    %162 = vector.shape_cast %161 : vector<16xf32> to vector<16x1xf32>
    %163 = vector.extract_strided_slice %0 {offsets = [0, 5], sizes = [1, 1], strides = [1, 1]} : vector<1x128xf32> to vector<1x1xf32>
    %164 = vector.broadcast %163 : vector<1x1xf32> to vector<16x1xf32>
    %165 = arith.addf %162, %164 : vector<16x1xf32>
    %166 = vector.shape_cast %165 : vector<16x1xf32> to vector<1x16xf32>
    %167 = vector.extract_strided_slice %165 {offsets = [0, 0], sizes = [8, 1], strides = [1, 1]} : vector<16x1xf32> to vector<8x1xf32>
    %168 = vector.extract_strided_slice %166 {offsets = [0, 0], sizes = [1, 8], strides = [1, 1]} : vector<1x16xf32> to vector<1x8xf32>
    %169 = vector.broadcast %167 : vector<8x1xf32> to vector<8x8xf32>
    %170 = vector.broadcast %168 : vector<1x8xf32> to vector<8x8xf32>
    %171 = arith.mulf %169, %170 : vector<8x8xf32>
    %c0_63 = arith.constant 0 : index
    %c0_64 = arith.constant 0 : index
    %c0_65 = arith.constant 0 : index
    %172 = vector.load %arg6[%c0_63, %c0_64, %c0_65] : memref<2x8x8xf32, #tpu.memory_space<vmem>>, vector<1x8x8xf32>
    %173 = vector.shape_cast %172 : vector<1x8x8xf32> to vector<8x8xf32>
    %174 = vector.shape_cast %171 : vector<8x8xf32> to vector<1x8x8xf32>
    tpu.vector_store %arg6[%c0_63, %c0_64, %c0_65], %174 {strides = array<i32>} : memref<2x8x8xf32, #tpu.memory_space<vmem>>, vector<1x8x8xf32>,
    %175 = vector.extract_strided_slice %165 {offsets = [8, 0], sizes = [8, 1], strides = [1, 1]} : vector<16x1xf32> to vector<8x1xf32>
    %176 = vector.extract_strided_slice %166 {offsets = [0, 8], sizes = [1, 8], strides = [1, 1]} : vector<1x16xf32> to vector<1x8xf32>
    %177 = vector.broadcast %175 : vector<8x1xf32> to vector<8x8xf32>
    %178 = vector.broadcast %176 : vector<1x8xf32> to vector<8x8xf32>
    %179 = arith.mulf %177, %178 : vector<8x8xf32>
    %c1_66 = arith.constant 1 : index
    %c0_67 = arith.constant 0 : index
    %c0_68 = arith.constant 0 : index
    %180 = vector.load %arg6[%c1_66, %c0_67, %c0_68] : memref<2x8x8xf32, #tpu.memory_space<vmem>>, vector<1x8x8xf32>
    %181 = vector.shape_cast %180 : vector<1x8x8xf32> to vector<8x8xf32>
    %182 = vector.shape_cast %179 : vector<8x8xf32> to vector<1x8x8xf32>
    tpu.vector_store %arg6[%c1_66, %c0_67, %c0_68], %182 {strides = array<i32>} : memref<2x8x8xf32, #tpu.memory_space<vmem>>, vector<1x8x8xf32>,
    return
  }
  func.func @transform_0(%arg0: i32) -> (i32, i32) {
    %c0_i32 = arith.constant 0 : i32
    %c0_i32_0 = arith.constant 0 : i32
    return %arg0, %c0_i32 : i32, i32
  }
  func.func @transform_1(%arg0: i32) -> (i32, i32) {
    %c0_i32 = arith.constant 0 : i32
    %c0_i32_0 = arith.constant 0 : i32
    return %arg0, %c0_i32 : i32, i32
  }
  func.func @transform_2(%arg0: i32) -> (i32, i32) {
    %c0_i32 = arith.constant 0 : i32
    %c0_i32_0 = arith.constant 0 : i32
    return %arg0, %c0_i32 : i32, i32
  }
  func.func @transform_3(%arg0: i32) -> (i32, i32) {
    %c0_i32 = arith.constant 0 : i32
    %c0_i32_0 = arith.constant 0 : i32
    %c0_i32_1 = arith.constant 0 : i32
    return %c0_i32, %c0_i32_0 : i32, i32
  }
  func.func @transform_4(%arg0: i32) -> (i32, i32) {
    %c0_i32 = arith.constant 0 : i32
    %c0_i32_0 = arith.constant 0 : i32
    %c0_i32_1 = arith.constant 0 : i32
    return %c0_i32, %c0_i32_0 : i32, i32
  }
  func.func @transform_5(%arg0: i32) -> (i32, i32, i32) {
    %c0_i32 = arith.constant 0 : i32
    %c0_i32_0 = arith.constant 0 : i32
    %c0_i32_1 = arith.constant 0 : i32
    return %arg0, %c0_i32, %c0_i32_0 : i32, i32, i32
  }
}

</mosaic_0001>

<llo_original>
// kernel: tpu_custom_call.1
$region0: #{tpu_custom_call.1}
  #allocation0 [shape = 'u32[]', space=smem, size = 0x4, offset = 0x4, fixed_abs, tag = 'smem constant byte address 0x4 - core index']
  #allocation1 [shape = 'u32[144,128]{1,0:T(1,128)}', space=vmem, size = 0x12000, scoped, tag = 'internal scratch']
  %s0 = inlined_call_operand.hbm [shape: f32[16,32], index: 0, kind: input, shape index: {}]
  %s1 = inlined_call_operand.hbm [shape: f32[16,32], index: 1, kind: input, shape index: {}]
  %s2 = inlined_call_operand.vmem [shape: f32[16,1], index: 2, kind: input, shape index: {}]
  %s3 = inlined_call_operand.hbm [shape: f32[32,512], index: 3, kind: input, shape index: {}]
  %s4 = inlined_call_operand.vmem [shape: f32[24,128], index: 4, kind: input, shape index: {}]
  %s5 = inlined_call_operand.hbm [shape: f32[2,8,8], index: 5, kind: output, shape index: {}]
  %s6 = sld [smem:[#allocation0]]
  $region42: #{tpu_custom_call.1} parent=0
    _
  %s8 = ssub.s32 1, %s6
  %s9 = scalar_select 0, %s8, %s6
  $region1: #{tpu_custom_call.1} parent=0
    #allocation2 [shape = 'u8[8192]{0}', space=vmem, size = 0x2000, scoped, tag = 'input window, operand 0, single buffered']
    #allocation3 [shape = 's32[1]{0}', space=sflag, size = 0x4, scoped, tag = 'scoped memory for tpu_custom_call.1']
    #allocation4 [shape = 's32[1]{0}', space=sflag, size = 0x4, scoped, tag = 'scoped memory for tpu_custom_call.1']
    #allocation5 [shape = 'u8[8192]{0}', space=vmem, size = 0x2000, scoped, tag = 'input window, operand 1, single buffered']
    #allocation6 [shape = 's32[1]{0}', space=sflag, size = 0x4, scoped, tag = 'scoped memory for tpu_custom_call.1']
    #allocation7 [shape = 'u8[65536]{0}', space=vmem, size = 0x10000, scoped, tag = 'input window, operand 3, single buffered']
    #allocation8 [shape = 'u8[8192]{0}', space=vmem, size = 0x2000, scoped, tag = 'output window, operand 0, single buffered']
    %10 = vsyncpa [#allocation3], 0
    %11 = vsyncpa [#allocation6], 0
    %12 = vsyncpa [#allocation4], 0
    // Predicated region
    $region2: #{tpu_custom_call.1} parent=1 // pred_check
      _
    $region3: #{tpu_custom_call.1} parent=1 // pred_check_branch
      %14 = sbr.rel (0) target = $region5
    $region4: #{tpu_custom_call.1} parent=1 // pred_region
      %s16 = ssub.s32 256, 256
      %17 = vsyncadd [#allocation3], %s16
      %s18 = sshll.u32 [#allocation2], 4
      %s19 = int_to_ptr.vmem [resolvable:$true] %s18
      %24 = dma.hbm_to_vmem [thread:$0]  %s0, 256, %s19, [#allocation3], 128, 128, 8
    $region5: #{tpu_custom_call.1} parent=1 // pred_fallthru
      _
    // Predicated region
    $region6: #{tpu_custom_call.1} parent=1 // pred_check
      _
    $region7: #{tpu_custom_call.1} parent=1 // pred_check_branch
      %26 = sbr.rel (0) target = $region9
    $region8: #{tpu_custom_call.1} parent=1 // pred_region
      %s28 = ssub.s32 256, 256
      %29 = vsyncadd [#allocation6], %s28
      %s30 = sshll.u32 [#allocation5], 4
      %s31 = int_to_ptr.vmem [resolvable:$true] %s30
      %36 = dma.hbm_to_vmem [thread:$0]  %s1, 256, %s31, [#allocation6], 128, 128, 8
    $region9: #{tpu_custom_call.1} parent=1 // pred_fallthru
      _
    // Predicated region
    $region10: #{tpu_custom_call.1} parent=1 // pred_check
      _
    $region11: #{tpu_custom_call.1} parent=1 // pred_check_branch
      %38 = sbr.rel (0) target = $region13
    $region12: #{tpu_custom_call.1} parent=1 // pred_region
      _
    $region13: #{tpu_custom_call.1} parent=1 // pred_fallthru
      _
    // Predicated region
    $region14: #{tpu_custom_call.1} parent=1 // pred_check
      _
    $region15: #{tpu_custom_call.1} parent=1 // pred_check_branch
      %40 = sbr.rel (0) target = $region17
    $region16: #{tpu_custom_call.1} parent=1 // pred_region
      %s42 = ssub.s32 2048, 2048
      %43 = vsyncadd [#allocation6], %s42
      %s44 = sshll.u32 [#allocation7], 4
      %s45 = int_to_ptr.vmem [resolvable:$true] %s44
      %50 = dma.hbm_to_vmem [thread:$0]  %s3, 2048, %s45, [#allocation6], 512, 512, 32
    $region17: #{tpu_custom_call.1} parent=1 // pred_fallthru
      _
    // Predicated region
    $region18: #{tpu_custom_call.1} parent=1 // pred_check
      _
    $region19: #{tpu_custom_call.1} parent=1 // pred_check_branch
      %52 = sbr.rel (0) target = $region21
    $region20: #{tpu_custom_call.1} parent=1 // pred_region
      _
    $region21: #{tpu_custom_call.1} parent=1 // pred_fallthru
      _
    // Predicated region
    $region22: #{tpu_custom_call.1} parent=1 // pred_check
      _
    $region23: #{tpu_custom_call.1} parent=1 // pred_check_branch
      %54 = sbr.rel (0) target = $region25
    $region24: #{tpu_custom_call.1} parent=1 // pred_region
      %55 = dma.done [#allocation3], 256
    $region25: #{tpu_custom_call.1} parent=1 // pred_fallthru
      _
    // Predicated region
    $region26: #{tpu_custom_call.1} parent=1 // pred_check
      _
    $region27: #{tpu_custom_call.1} parent=1 // pred_check_branch
      %57 = sbr.rel (0) target = $region29
    $region28: #{tpu_custom_call.1} parent=1 // pred_region
      %58 = dma.done [#allocation6], 256
    $region29: #{tpu_custom_call.1} parent=1 // pred_fallthru
      _
    // Predicated region
    $region30: #{tpu_custom_call.1} parent=1 // pred_check
      _
    $region31: #{tpu_custom_call.1} parent=1 // pred_check_branch
      %60 = sbr.rel (0) target = $region33
    $region32: #{tpu_custom_call.1} parent=1 // pred_region
      %61 = dma.done [#allocation6], 2048
    $region33: #{tpu_custom_call.1} parent=1 // pred_fallthru
      _
    %v62 = vld [vmem:[%s4 + $0x10] sm:$0x1]
    %v63 = vld [vmem:[#allocation2] sm:$0xff]
    %v64 = vld [vmem:[#allocation2 + $0x8] sm:$0xff]
    %v65 = vld [vmem:[#allocation5] sm:$0xff]
    %v66 = vld [vmem:[#allocation5 + $0x8] sm:$0xff]
    %v67 = vld [vmem:[%s2] sm:$0xff]
    %v68 = vld [vmem:[%s2 + $0x8] sm:$0xff]
    %v69 = vld [vmem:[#allocation7] sm:$0xff]
    %v70 = vld [vmem:[#allocation7 + $0x20] sm:$0xff]
    %v71 = vld [vmem:[#allocation7 + $0x40] sm:$0xff]
    %v72 = vld [vmem:[#allocation7 + $0x60] sm:$0xff]
    %v73 = vld [vmem:[%s4] sm:$0x1]
    %v74 = vld [vmem:[%s4 + $0x1] sm:$0x1]
    %v75 = vld [vmem:[%s4 + $0x2] sm:$0x1]
    %77 = vset.pattern.permute.xlu0 0
    %78 = vperm.xlu0 %77, %v67
    %v79 = vpop.permute.xlu0 %78
    %82 = vset.pattern.permute.xlu0 0
    %83 = vperm.xlu0 %82, %v68
    %v84 = vpop.permute.xlu0 %83
    %v86 = vlaneseq
    %v87 = vshrl.u32 %v86, 7
    %v88 = vsub.s32 0, %v87
    %v89 = vrot.slane %v73, %v88
    %v90 = vmul.f32 %v79, %v89
    %v91 = vmul.f32 %v84, %v89
    %vm92 = vcmask 261120
    %v94 = vsel %vm92, %v63, 0
    %v97 = vsel %vm92, %v64, 0
    %99 = vmatprep.subr.mxu0 0.0
    %100 = vmatpush1.msra.mxu0 %v69
    %101 = vmatprep.subr.mxu0 0.0
    %102 = vmatpush1.msra.mxu0 %v70
    %103 = vmatprep.subr.mxu0 0.0
    %104 = vmatpush1.msra.mxu0 %v71
    %105 = vmatprep.subr.mxu0 0.0
    %106 = vmatpush1.msra.mxu0 %v72
    %107 = vmatprep.subr.mxu0 0.0
    %108 = vmatpush1.msra.mxu0 0.0
    %109 = vmatprep.subr.mxu0 0.0
    %110 = vmatpush1.msra.mxu0 0.0
    %111 = vmatprep.subr.mxu0 0.0
    %112 = vmatpush1.msra.mxu0 0.0
    %113 = vmatprep.subr.mxu0 0.0
    %114 = vmatpush1.msra.mxu0 0.0
    %115 = vmatprep.subr.mxu0 0.0
    %116 = vmatpush1.msra.mxu0 0.0
    %117 = vmatprep.subr.mxu0 0.0
    %118 = vmatpush1.msra.mxu0 0.0
    %119 = vmatprep.subr.mxu0 0.0
    %120 = vmatpush1.msra.mxu0 0.0
    %121 = vmatprep.subr.mxu0 0.0
    %122 = vmatpush1.msra.mxu0 0.0
    %123 = vmatprep.subr.mxu0 0.0
    %124 = vmatpush1.msra.mxu0 0.0
    %125 = vmatprep.subr.mxu0 0.0
    %126 = vmatpush1.msra.mxu0 0.0
    %127 = vmatprep.subr.mxu0 0.0
    %128 = vmatpush1.msra.mxu0 0.0
    %129 = vmatprep.subr.mxu0 0.0
    %130 = vmatpush1.msra.mxu0 0.0
    %131 = vmatprep.subr.mxu0 0.0
    %132 = vmatpush1.msra.mxu0 0.0
    %133 = vmatprep.subr.mxu0 0.0
    %134 = vmatpush1.msra.mxu0 0.0
    %135 = vmatprep.subr.mxu0 0.0
    %136 = vmatpush1.msra.mxu0 0.0
    %137 = vmatprep.subr.mxu0 0.0
    %138 = vmatpush1.msra.mxu0 0.0
    %139 = vmatprep.subr.mxu0 0.0
    %140 = vmatpush1.msra.mxu0 0.0
    %141 = vmatprep.subr.mxu0 0.0
    %142 = vmatpush1.msra.mxu0 0.0
    %143 = vmatprep.subr.mxu0 0.0
    %144 = vmatpush1.msra.mxu0 0.0
    %145 = vmatprep.subr.mxu0 0.0
    %146 = vmatpush1.msra.mxu0 0.0
    %147 = vmatprep.subr.mxu0 0.0
    %148 = vmatpush1.msra.mxu0 0.0
    %149 = vmatprep.subr.mxu0 0.0
    %150 = vmatpush1.msra.mxu0 0.0
    %151 = vmatprep.subr.mxu0 0.0
    %152 = vmatpush1.msra.mxu0 0.0
    %153 = vmatprep.subr.mxu0 0.0
    %154 = vmatpush1.msra.mxu0 0.0
    %155 = vmatprep.subr.mxu0 0.0
    %156 = vmatpush1.msra.mxu0 0.0
    %157 = vmatprep.subr.mxu0 0.0
    %158 = vmatpush1.msra.mxu0 0.0
    %159 = vmatprep.subr.mxu0 0.0
    %160 = vmatpush1.msra.mxu0 0.0
    %161 = vmatprep.subr.mxu0 0.0
    %162 = vmatpush1.msra.mxu0 0.0
    %163 = vmatprep.mubr.f32.mxu0 0.0
    %164 = vmatmul.mubr.f32.gmra.mrb[0].mxu0 %v94
    %v165 = vpop.f32.mrb[0].mxu0
    %v166 = vadd.f32 %v90, %v165
    %v167 = vpop.f32.mrb[0].mxu0
    %168 = vmatprep.mubr.f32.mxu0 0.0
    %169 = vmatmul.mubr.f32.gmra.mrb[0].mxu0 %v97
    %v170 = vpop.f32.mrb[0].mxu0
    %v171 = vadd.f32 %v91, %v170
    %v172 = vpop.f32.mrb[0].mxu0
    %173 = vdwg.mxu0
    %v174 = vlaneseq
    %v175 = vshrl.u32 %v174, 7
    %v176 = vsub.s32 0, %v175
    %v177 = vrot.slane %v74, %v176
    %v178 = vadd.f32 %v166, %v177
    %v179 = vadd.f32 %v171, %v177
    %v180 = vmul.f32 %v178, 0.5
    %v181 = vmul.f32 %v179, 0.5
    %v182 = vmul.f32 %v178, 0.70710677
    %v183 = vmul.f32 %v179, 0.70710677
    %v184 = verf.f32.pop %v182
    %v185 = verf.f32.pop %v183
    %v186 = vadd.f32 %v184, 1.0
    %v187 = vadd.f32 %v185, 1.0
    %v188 = vmul.f32 %v180, %v186
    %v189 = vmul.f32 %v181, %v187
    %v190 = vlaneseq
    %v191 = vshrl.u32 %v190, 7
    %v192 = vsub.s32 0, %v191
    %v193 = vrot.slane %v75, %v192
    %v194 = vmul.f32 %v188, %v193
    %v195 = vmul.f32 %v189, %v193
    %196 = vadd.xlane.f32.xlu0 %v194
    %v197 = vpop.xlane.xlu0 %196
    %198 = vadd.xlane.f32.xlu0 %v195
    %v199 = vpop.xlane.xlu0 %198
    %v200 = vlaneseq
    %v201 = vshrl.u32 %v200, 7
    %v202 = vsub.s32 0, %v201
    %v203 = vrot.slane %v62, %v202
    %v204 = vadd.f32 %v197, %v203
    %v205 = vadd.f32 %v199, %v203
    %v206 = vsub.f32 0.0, %v204
    %v207 = vsub.f32 0.0, %v205
    %v208 = vmul.f32 %v206, 1.442695
    %v209 = vpow.pop %v208
    %v210 = vmul.f32 %v207, 1.442695
    %v211 = vpow.pop %v210
    %v212 = vadd.f32 %v209, 1.0
    %v213 = vadd.f32 %v211, 1.0
    %v214 = vrcp.pop %v212
    %v215 = vmul.f32 1.0, %v214
    %v216 = vrcp.pop %v213
    %v217 = vmul.f32 1.0, %v216
    %v218 = vadd.f32 %v215, 1.0
    %v219 = vadd.f32 %v217, 1.0
    %221 = vset.pattern.permute.xlu0 0
    %222 = vperm.xlu0 %221, %v218
    %v223 = vpop.permute.xlu0 %222
    %226 = vset.pattern.permute.xlu0 0
    %227 = vperm.xlu0 %226, %v219
    %v228 = vpop.permute.xlu0 %227
    %v230 = vmul.f32 %v63, %v223
    %v231 = vmul.f32 %v64, %v228
    %v232 = vld [vmem:[#allocation7 + $0x8] sm:$0xff]
    %v233 = vld [vmem:[#allocation7 + $0x28] sm:$0xff]
    %v234 = vld [vmem:[#allocation7 + $0x48] sm:$0xff]
    %v235 = vld [vmem:[#allocation7 + $0x68] sm:$0xff]
    %v236 = vld [vmem:[%s4 + $0x3] sm:$0x1]
    %v237 = vld [vmem:[%s4 + $0x4] sm:$0x1]
    %v238 = vlaneseq
    %v239 = vshrl.u32 %v238, 7
    %v240 = vsub.s32 0, %v239
    %v241 = vrot.slane %v236, %v240
    %v243 = vsel %vm92, %v230, 0
    %v246 = vsel %vm92, %v231, 0
    %248 = vmatprep.subr.mxu0 0.0
    %249 = vmatpush1.msra.mxu0 %v232
    %250 = vmatprep.subr.mxu0 0.0
    %251 = vmatpush1.msra.mxu0 %v233
    %252 = vmatprep.subr.mxu0 0.0
    %253 = vmatpush1.msra.mxu0 %v234
    %254 = vmatprep.subr.mxu0 0.0
    %255 = vmatpush1.msra.mxu0 %v235
    %256 = vmatprep.subr.mxu0 0.0
    %257 = vmatpush1.msra.mxu0 0.0
    %258 = vmatprep.subr.mxu0 0.0
    %259 = vmatpush1.msra.mxu0 0.0
    %260 = vmatprep.subr.mxu0 0.0
    %261 = vmatpush1.msra.mxu0 0.0
    %262 = vmatprep.subr.mxu0 0.0
    %263 = vmatpush1.msra.mxu0 0.0
    %264 = vmatprep.subr.mxu0 0.0
    %265 = vmatpush1.msra.mxu0 0.0
    %266 = vmatprep.subr.mxu0 0.0
    %267 = vmatpush1.msra.mxu0 0.0
    %268 = vmatprep.subr.mxu0 0.0
    %269 = vmatpush1.msra.mxu0 0.0
    %270 = vmatprep.subr.mxu0 0.0
    %271 = vmatpush1.msra.mxu0 0.0
    %272 = vmatprep.subr.mxu0 0.0
    %273 = vmatpush1.msra.mxu0 0.0
    %274 = vmatprep.subr.mxu0 0.0
    %275 = vmatpush1.msra.mxu0 0.0
    %276 = vmatprep.subr.mxu0 0.0
    %277 = vmatpush1.msra.mxu0 0.0
    %278 = vmatprep.subr.mxu0 0.0
    %279 = vmatpush1.msra.mxu0 0.0
    %280 = vmatprep.subr.mxu0 0.0
    %281 = vmatpush1.msra.mxu0 0.0
    %282 = vmatprep.subr.mxu0 0.0
    %283 = vmatpush1.msra.mxu0 0.0
    %284 = vmatprep.subr.mxu0 0.0
    %285 = vmatpush1.msra.mxu0 0.0
    %286 = vmatprep.subr.mxu0 0.0
    %287 = vmatpush1.msra.mxu0 0.0
    %288 = vmatprep.subr.mxu0 0.0
    %289 = vmatpush1.msra.mxu0 0.0
    %290 = vmatprep.subr.mxu0 0.0
    %291 = vmatpush1.msra.mxu0 0.0
    %292 = vmatprep.subr.mxu0 0.0
    %293 = vmatpush1.msra.mxu0 0.0
    %294 = vmatprep.subr.mxu0 0.0
    %295 = vmatpush1.msra.mxu0 0.0
    %296 = vmatprep.subr.mxu0 0.0
    %297 = vmatpush1.msra.mxu0 0.0
    %298 = vmatprep.subr.mxu0 0.0
    %299 = vmatpush1.msra.mxu0 0.0
    %300 = vmatprep.subr.mxu0 0.0
    %301 = vmatpush1.msra.mxu0 0.0
    %302 = vmatprep.subr.mxu0 0.0
    %303 = vmatpush1.msra.mxu0 0.0
    %304 = vmatprep.subr.mxu0 0.0
    %305 = vmatpush1.msra.mxu0 0.0
    %306 = vmatprep.subr.mxu0 0.0
    %307 = vmatpush1.msra.mxu0 0.0
    %308 = vmatprep.subr.mxu0 0.0
    %309 = vmatpush1.msra.mxu0 0.0
    %310 = vmatprep.subr.mxu0 0.0
    %311 = vmatpush1.msra.mxu0 0.0
    %312 = vmatprep.mubr.f32.mxu0 0.0
    %313 = vmatmul.mubr.f32.gmra.mrb[0].mxu0 %v243
    %v314 = vpop.f32.mrb[0].mxu0
    %v315 = vadd.f32 %v241, %v314
    %v316 = vpop.f32.mrb[0].mxu0
    %317 = vmatprep.mubr.f32.mxu0 0.0
    %318 = vmatmul.mubr.f32.gmra.mrb[0].mxu0 %v246
    %v319 = vpop.f32.mrb[0].mxu0
    %v320 = vadd.f32 %v241, %v319
    %v321 = vpop.f32.mrb[0].mxu0
    %322 = vdwg.mxu0
    %v323 = vmul.f32 %v315, 0.5
    %v324 = vmul.f32 %v320, 0.5
    %v325 = vmul.f32 %v315, 0.70710677
    %v326 = vmul.f32 %v320, 0.70710677
    %v327 = verf.f32.pop %v325
    %v328 = verf.f32.pop %v326
    %v329 = vadd.f32 %v327, 1.0
    %v330 = vadd.f32 %v328, 1.0
    %v331 = vmul.f32 %v323, %v329
    %v332 = vmul.f32 %v324, %v330
    %v333 = vlaneseq
    %v334 = vshrl.u32 %v333, 7
    %v335 = vsub.s32 0, %v334
    %v336 = vrot.slane %v237, %v335
    %v337 = vmul.f32 %v331, %v336
    %v338 = vmul.f32 %v332, %v336
    %339 = vadd.xlane.f32.xlu0 %v337
    %v340 = vpop.xlane.xlu0 %339
    %341 = vadd.xlane.f32.xlu0 %v338
    %v342 = vpop.xlane.xlu0 %341
    %v343 = vadd.f32 %v340, %v203
    %v344 = vadd.f32 %v342, %v203
    %v345 = vld [vmem:[%s4 + $0x5] sm:$0x1]
    %v346 = vld [vmem:[%s4 + $0x6] sm:$0x1]
    %v347 = vld [vmem:[%s4 + $0x7] sm:$0x1]
    %349 = vset.pattern.permute.xlu0 1
    %350 = vperm.xlu0 %349, %v343
    %v351 = vpop.permute.xlu0 %350
    %354 = vset.pattern.permute.xlu0 1
    %355 = vperm.xlu0 %354, %v344
    %v356 = vpop.permute.xlu0 %355
    %v358 = vlaneseq
    %v359 = vshrl.u32 %v358, 7
    %v360 = vsub.s32 0, %v359
    %v361 = vrot.slane %v345, %v360
    %v362 = vmul.f32 %v351, %v361
    %v363 = vmul.f32 %v356, %v361
    %v364 = vlaneseq
    %v365 = vshrl.u32 %v364, 7
    %v366 = vsub.s32 0, %v365
    %v367 = vrot.slane %v346, %v366
    %v368 = vadd.f32 %v362, %v367
    %v369 = vadd.f32 %v363, %v367
    %v370 = vmul.f32 %v368, 0.5
    %v371 = vmul.f32 %v369, 0.5
    %v372 = vmul.f32 %v368, 0.70710677
    %v373 = vmul.f32 %v369, 0.70710677
    %v374 = verf.f32.pop %v372
    %v375 = verf.f32.pop %v373
    %v376 = vadd.f32 %v374, 1.0
    %v377 = vadd.f32 %v375, 1.0
    %v378 = vmul.f32 %v370, %v376
    %v379 = vmul.f32 %v371, %v377
    %v380 = vlaneseq
    %v381 = vshrl.u32 %v380, 7
    %v382 = vsub.s32 0, %v381
    %v383 = vrot.slane %v347, %v382
    %v384 = vmul.f32 %v378, %v383
    %v385 = vmul.f32 %v379, %v383
    %386 = vadd.xlane.f32.xlu0 %v384
    %v387 = vpop.xlane.xlu0 %386
    %388 = vadd.xlane.f32.xlu0 %v385
    %v389 = vpop.xlane.xlu0 %388
    %v390 = vadd.f32 %v387, %v203
    %v391 = vadd.f32 %v389, %v203
    %v392 = vld [vmem:[#allocation7 + $0x10] sm:$0xff]
    %v393 = vld [vmem:[#allocation7 + $0x30] sm:$0xff]
    %v394 = vld [vmem:[#allocation7 + $0x50] sm:$0xff]
    %v395 = vld [vmem:[#allocation7 + $0x70] sm:$0xff]
    %v396 = vld [vmem:[%s4 + $0x8] sm:$0x1]
    %v397 = vld [vmem:[%s4 + $0x9] sm:$0x1]
    %v398 = vld [vmem:[%s4 + $0xa] sm:$0x1]
    %400 = vset.pattern.permute.xlu0 2
    %401 = vperm.xlu0 %400, %v390
    %v402 = vpop.permute.xlu0 %401
    %405 = vset.pattern.permute.xlu0 2
    %406 = vperm.xlu0 %405, %v391
    %v407 = vpop.permute.xlu0 %406
    %v409 = vlaneseq
    %v410 = vshrl.u32 %v409, 7
    %v411 = vsub.s32 0, %v410
    %v412 = vrot.slane %v396, %v411
    %v413 = vmul.f32 %v402, %v412
    %v414 = vmul.f32 %v407, %v412
    %v416 = vsel %vm92, %v65, 0
    %v419 = vsel %vm92, %v66, 0
    %421 = vmatprep.subr.mxu0 0.0
    %422 = vmatpush1.msra.mxu0 %v392
    %423 = vmatprep.subr.mxu0 0.0
    %424 = vmatpush1.msra.mxu0 %v393
    %425 = vmatprep.subr.mxu0 0.0
    %426 = vmatpush1.msra.mxu0 %v394
    %427 = vmatprep.subr.mxu0 0.0
    %428 = vmatpush1.msra.mxu0 %v395
    %429 = vmatprep.subr.mxu0 0.0
    %430 = vmatpush1.msra.mxu0 0.0
    %431 = vmatprep.subr.mxu0 0.0
    %432 = vmatpush1.msra.mxu0 0.0
    %433 = vmatprep.subr.mxu0 0.0
    %434 = vmatpush1.msra.mxu0 0.0
    %435 = vmatprep.subr.mxu0 0.0
    %436 = vmatpush1.msra.mxu0 0.0
    %437 = vmatprep.subr.mxu0 0.0
    %438 = vmatpush1.msra.mxu0 0.0
    %439 = vmatprep.subr.mxu0 0.0
    %440 = vmatpush1.msra.mxu0 0.0
    %441 = vmatprep.subr.mxu0 0.0
    %442 = vmatpush1.msra.mxu0 0.0
    %443 = vmatprep.subr.mxu0 0.0
    %444 = vmatpush1.msra.mxu0 0.0
    %445 = vmatprep.subr.mxu0 0.0
    %446 = vmatpush1.msra.mxu0 0.0
    %447 = vmatprep.subr.mxu0 0.0
    %448 = vmatpush1.msra.mxu0 0.0
    %449 = vmatprep.subr.mxu0 0.0
    %450 = vmatpush1.msra.mxu0 0.0
    %451 = vmatprep.subr.mxu0 0.0
    %452 = vmatpush1.msra.mxu0 0.0
    %453 = vmatprep.subr.mxu0 0.0
    %454 = vmatpush1.msra.mxu0 0.0
    %455 = vmatprep.subr.mxu0 0.0
    %456 = vmatpush1.msra.mxu0 0.0
    %457 = vmatprep.subr.mxu0 0.0
    %458 = vmatpush1.msra.mxu0 0.0
    %459 = vmatprep.subr.mxu0 0.0
    %460 = vmatpush1.msra.mxu0 0.0
    %461 = vmatprep.subr.mxu0 0.0
    %462 = vmatpush1.msra.mxu0 0.0
    %463 = vmatprep.subr.mxu0 0.0
    %464 = vmatpush1.msra.mxu0 0.0
    %465 = vmatprep.subr.mxu0 0.0
    %466 = vmatpush1.msra.mxu0 0.0
    %467 = vmatprep.subr.mxu0 0.0
    %468 = vmatpush1.msra.mxu0 0.0
    %469 = vmatprep.subr.mxu0 0.0
    %470 = vmatpush1.msra.mxu0 0.0
    %471 = vmatprep.subr.mxu0 0.0
    %472 = vmatpush1.msra.mxu0 0.0
    %473 = vmatprep.subr.mxu0 0.0
    %474 = vmatpush1.msra.mxu0 0.0
    %475 = vmatprep.subr.mxu0 0.0
    %476 = vmatpush1.msra.mxu0 0.0
    %477 = vmatprep.subr.mxu0 0.0
    %478 = vmatpush1.msra.mxu0 0.0
    %479 = vmatprep.subr.mxu0 0.0
    %480 = vmatpush1.msra.mxu0 0.0
    %481 = vmatprep.subr.mxu0 0.0
    %482 = vmatpush1.msra.mxu0 0.0
    %483 = vmatprep.subr.mxu0 0.0
    %484 = vmatpush1.msra.mxu0 0.0
    %485 = vmatprep.mubr.f32.mxu0 0.0
    %486 = vmatmul.mubr.f32.gmra.mrb[0].mxu0 %v416
    %v487 = vpop.f32.mrb[0].mxu0
    %v488 = vadd.f32 %v413, %v487
    %v489 = vpop.f32.mrb[0].mxu0
    %490 = vmatprep.mubr.f32.mxu0 0.0
    %491 = vmatmul.mubr.f32.gmra.mrb[0].mxu0 %v419
    %v492 = vpop.f32.mrb[0].mxu0
    %v493 = vadd.f32 %v414, %v492
    %v494 = vpop.f32.mrb[0].mxu0
    %495 = vdwg.mxu0
    %v496 = vlaneseq
    %v497 = vshrl.u32 %v496, 7
    %v498 = vsub.s32 0, %v497
    %v499 = vrot.slane %v397, %v498
    %v500 = vadd.f32 %v488, %v499
    %v501 = vadd.f32 %v493, %v499
    %v502 = vmul.f32 %v500, 0.5
    %v503 = vmul.f32 %v501, 0.5
    %v504 = vmul.f32 %v500, 0.70710677
    %v505 = vmul.f32 %v501, 0.70710677
    %v506 = verf.f32.pop %v504
    %v507 = verf.f32.pop %v505
    %v508 = vadd.f32 %v506, 1.0
    %v509 = vadd.f32 %v507, 1.0
    %v510 = vmul.f32 %v502, %v508
    %v511 = vmul.f32 %v503, %v509
    %v512 = vlaneseq
    %v513 = vshrl.u32 %v512, 7
    %v514 = vsub.s32 0, %v513
    %v515 = vrot.slane %v398, %v514
    %v516 = vmul.f32 %v510, %v515
    %v517 = vmul.f32 %v511, %v515
    %518 = vadd.xlane.f32.xlu0 %v516
    %v519 = vpop.xlane.xlu0 %518
    %520 = vadd.xlane.f32.xlu0 %v517
    %v521 = vpop.xlane.xlu0 %520
    %v522 = vadd.f32 %v519, %v203
    %v523 = vadd.f32 %v521, %v203
    %v524 = vsub.f32 0.0, %v522
    %v525 = vsub.f32 0.0, %v523
    %v526 = vmul.f32 %v524, 1.442695
    %v527 = vpow.pop %v526
    %v528 = vmul.f32 %v525, 1.442695
    %v529 = vpow.pop %v528
    %v530 = vadd.f32 %v527, 1.0
    %v531 = vadd.f32 %v529, 1.0
    %v532 = vrcp.pop %v530
    %v533 = vmul.f32 1.0, %v532
    %v534 = vrcp.pop %v531
    %v535 = vmul.f32 1.0, %v534
    %v536 = vadd.f32 %v533, 1.0
    %v537 = vadd.f32 %v535, 1.0
    %539 = vset.pattern.permute.xlu0 3
    %540 = vperm.xlu0 %539, %v536
    %v541 = vpop.permute.xlu0 %540
    %544 = vset.pattern.permute.xlu0 3
    %545 = vperm.xlu0 %544, %v537
    %v546 = vpop.permute.xlu0 %545
    %v548 = vmul.f32 %v65, %v541
    %v549 = vmul.f32 %v66, %v546
    %v550 = vld [vmem:[#allocation7 + $0x18] sm:$0xff]
    %v551 = vld [vmem:[#allocation7 + $0x38] sm:$0xff]
    %v552 = vld [vmem:[#allocation7 + $0x58] sm:$0xff]
    %v553 = vld [vmem:[#allocation7 + $0x78] sm:$0xff]
    %v554 = vld [vmem:[%s4 + $0xb] sm:$0x1]
    %v555 = vld [vmem:[%s4 + $0xc] sm:$0x1]
    %v556 = vlaneseq
    %v557 = vshrl.u32 %v556, 7
    %v558 = vsub.s32 0, %v557
    %v559 = vrot.slane %v554, %v558
    %v561 = vsel %vm92, %v548, 0
    %v564 = vsel %vm92, %v549, 0
    %566 = vmatprep.subr.mxu0 0.0
    %567 = vmatpush1.msra.mxu0 %v550
    %568 = vmatprep.subr.mxu0 0.0
    %569 = vmatpush1.msra.mxu0 %v551
    %570 = vmatprep.subr.mxu0 0.0
    %571 = vmatpush1.msra.mxu0 %v552
    %572 = vmatprep.subr.mxu0 0.0
    %573 = vmatpush1.msra.mxu0 %v553
    %574 = vmatprep.subr.mxu0 0.0
    %575 = vmatpush1.msra.mxu0 0.0
    %576 = vmatprep.subr.mxu0 0.0
    %577 = vmatpush1.msra.mxu0 0.0
    %578 = vmatprep.subr.mxu0 0.0
    %579 = vmatpush1.msra.mxu0 0.0
    %580 = vmatprep.subr.mxu0 0.0
    %581 = vmatpush1.msra.mxu0 0.0
    %582 = vmatprep.subr.mxu0 0.0
    %583 = vmatpush1.msra.mxu0 0.0
    %584 = vmatprep.subr.mxu0 0.0
    %585 = vmatpush1.msra.mxu0 0.0
    %586 = vmatprep.subr.mxu0 0.0
    %587 = vmatpush1.msra.mxu0 0.0
    %588 = vmatprep.subr.mxu0 0.0
    %589 = vmatpush1.msra.mxu0 0.0
    %590 = vmatprep.subr.mxu0 0.0
    %591 = vmatpush1.msra.mxu0 0.0
    %592 = vmatprep.subr.mxu0 0.0
    %593 = vmatpush1.msra.mxu0 0.0
    %594 = vmatprep.subr.mxu0 0.0
    %595 = vmatpush1.msra.mxu0 0.0
    %596 = vmatprep.subr.mxu0 0.0
    %597 = vmatpush1.msra.mxu0 0.0
    %598 = vmatprep.subr.mxu0 0.0
    %599 = vmatpush1.msra.mxu0 0.0
    %600 = vmatprep.subr.mxu0 0.0
    %601 = vmatpush1.msra.mxu0 0.0
    %602 = vmatprep.subr.mxu0 0.0
    %603 = vmatpush1.msra.mxu0 0.0
    %604 = vmatprep.subr.mxu0 0.0
    %605 = vmatpush1.msra.mxu0 0.0
    %606 = vmatprep.subr.mxu0 0.0
    %607 = vmatpush1.msra.mxu0 0.0
    %608 = vmatprep.subr.mxu0 0.0
    %609 = vmatpush1.msra.mxu0 0.0
    %610 = vmatprep.subr.mxu0 0.0
    %611 = vmatpush1.msra.mxu0 0.0
    %612 = vmatprep.subr.mxu0 0.0
    %613 = vmatpush1.msra.mxu0 0.0
    %614 = vmatprep.subr.mxu0 0.0
    %615 = vmatpush1.msra.mxu0 0.0
    %616 = vmatprep.subr.mxu0 0.0
    %617 = vmatpush1.msra.mxu0 0.0
    %618 = vmatprep.subr.mxu0 0.0
    %619 = vmatpush1.msra.mxu0 0.0
    %620 = vmatprep.subr.mxu0 0.0
    %621 = vmatpush1.msra.mxu0 0.0
    %622 = vmatprep.subr.mxu0 0.0
    %623 = vmatpush1.msra.mxu0 0.0
    %624 = vmatprep.subr.mxu0 0.0
    %625 = vmatpush1.msra.mxu0 0.0
    %626 = vmatprep.subr.mxu0 0.0
    %627 = vmatpush1.msra.mxu0 0.0
    %628 = vmatprep.subr.mxu0 0.0
    %629 = vmatpush1.msra.mxu0 0.0
    %630 = vmatprep.mubr.f32.mxu0 0.0
    %631 = vmatmul.mubr.f32.gmra.mrb[0].mxu0 %v561
    %v632 = vpop.f32.mrb[0].mxu0
    %v633 = vadd.f32 %v559, %v632
    %v634 = vpop.f32.mrb[0].mxu0
    %635 = vmatprep.mubr.f32.mxu0 0.0
    %636 = vmatmul.mubr.f32.gmra.mrb[0].mxu0 %v564
    %v637 = vpop.f32.mrb[0].mxu0
    %v638 = vadd.f32 %v559, %v637
    %v639 = vpop.f32.mrb[0].mxu0
    %640 = vdwg.mxu0
    %v641 = vmul.f32 %v633, 0.5
    %v642 = vmul.f32 %v638, 0.5
    %v643 = vmul.f32 %v633, 0.70710677
    %v644 = vmul.f32 %v638, 0.70710677
    %v645 = verf.f32.pop %v643
    %v646 = verf.f32.pop %v644
    %v647 = vadd.f32 %v645, 1.0
    %v648 = vadd.f32 %v646, 1.0
    %v649 = vmul.f32 %v641, %v647
    %v650 = vmul.f32 %v642, %v648
    %v651 = vlaneseq
    %v652 = vshrl.u32 %v651, 7
    %v653 = vsub.s32 0, %v652
    %v654 = vrot.slane %v555, %v653
    %v655 = vmul.f32 %v649, %v654
    %v656 = vmul.f32 %v650, %v654
    %657 = vadd.xlane.f32.xlu0 %v655
    %v658 = vpop.xlane.xlu0 %657
    %659 = vadd.xlane.f32.xlu0 %v656
    %v660 = vpop.xlane.xlu0 %659
    %v661 = vadd.f32 %v658, %v203
    %v662 = vadd.f32 %v660, %v203
    %v663 = vld [vmem:[%s4 + $0xd] sm:$0x1]
    %v664 = vld [vmem:[%s4 + $0xe] sm:$0x1]
    %v665 = vld [vmem:[%s4 + $0xf] sm:$0x1]
    %667 = vset.pattern.permute.xlu0 4
    %668 = vperm.xlu0 %667, %v661
    %v669 = vpop.permute.xlu0 %668
    %672 = vset.pattern.permute.xlu0 4
    %673 = vperm.xlu0 %672, %v662
    %v674 = vpop.permute.xlu0 %673
    %v676 = vlaneseq
    %v677 = vshrl.u32 %v676, 7
    %v678 = vsub.s32 0, %v677
    %v679 = vrot.slane %v663, %v678
    %v680 = vmul.f32 %v669, %v679
    %v681 = vmul.f32 %v674, %v679
    %v682 = vlaneseq
    %v683 = vshrl.u32 %v682, 7
    %v684 = vsub.s32 0, %v683
    %v685 = vrot.slane %v664, %v684
    %v686 = vadd.f32 %v680, %v685
    %v687 = vadd.f32 %v681, %v685
    %v688 = vmul.f32 %v686, 0.5
    %v689 = vmul.f32 %v687, 0.5
    %v690 = vmul.f32 %v686, 0.70710677
    %v691 = vmul.f32 %v687, 0.70710677
    %v692 = verf.f32.pop %v690
    %v693 = verf.f32.pop %v691
    %v694 = vadd.f32 %v692, 1.0
    %v695 = vadd.f32 %v693, 1.0
    %v696 = vmul.f32 %v688, %v694
    %v697 = vmul.f32 %v689, %v695
    %v698 = vlaneseq
    %v699 = vshrl.u32 %v698, 7
    %v700 = vsub.s32 0, %v699
    %v701 = vrot.slane %v665, %v700
    %v702 = vmul.f32 %v696, %v701
    %v703 = vmul.f32 %v697, %v701
    %704 = vadd.xlane.f32.xlu0 %v702
    %v705 = vpop.xlane.xlu0 %704
    %706 = vadd.xlane.f32.xlu0 %v703
    %v707 = vpop.xlane.xlu0 %706
    %v708 = vadd.f32 %v705, %v203
    %v709 = vadd.f32 %v707, %v203
    %711 = vset.pattern.permute.xlu0 5
    %712 = vperm.xlu0 %711, %v708
    %v713 = vpop.permute.xlu0 %712
    %v715 = vlaneseq
    %v716 = vand.u32 %v715, 127
    %v717 = vlaneseq
    %v718 = vshrl.u32 %v717, 7
    %v719 = vsub.s32 %v716, %v718
    %v720 = vrot.slane %v713, %v719
    %vm721 = vcmask 1042434
    %v722 = vsel %vm721, %v720, %v720
    %vm723 = vcmask 1043459
    %v724 = vsel %vm723, %v720, %v722
    %vm725 = vcmask 1044484
    %v726 = vsel %vm725, %v720, %v724
    %vm727 = vcmask 1045509
    %v728 = vsel %vm727, %v720, %v726
    %vm729 = vcmask 1046534
    %v730 = vsel %vm729, %v720, %v728
    %vm731 = vcmask 1047559
    %v732 = vsel %vm731, %v720, %v730
    %v734 = vmul.f32 %v713, %v732
    %vm735 = vcmask 64512
    %736 = vst.msk [vmem:[#allocation8] sm:$0xff] %vm735, %v734
    %738 = vset.pattern.permute.xlu0 5
    %739 = vperm.xlu0 %738, %v709
    %v740 = vpop.permute.xlu0 %739
    %v742 = vlaneseq
    %v743 = vshrl.u32 %v742, 7
    %v744 = vsub.s32 %v716, %v743
    %v745 = vrot.slane %v740, %v744
    %v746 = vsel %vm721, %v745, %v745
    %v747 = vsel %vm723, %v745, %v746
    %v748 = vsel %vm725, %v745, %v747
    %v749 = vsel %vm727, %v745, %v748
    %v750 = vsel %vm729, %v745, %v749
    %v751 = vsel %vm731, %v745, %v750
    %v753 = vmul.f32 %v740, %v751
    %s754 = scalar_lea.vmem [#allocation8], 8
    %755 = vst.msk [vmem:[%s754] sm:$0xff] %vm735, %v753
    // Predicated region
    $region34: #{tpu_custom_call.1} parent=1 // pred_check
      _
    $region35: #{tpu_custom_call.1} parent=1 // pred_check_branch
      %757 = sbr.rel (0) target = $region37
    $region36: #{tpu_custom_call.1} parent=1 // pred_region
      %s759 = ssub.s32 256, 256
      %760 = vsyncadd [#allocation4], %s759
      %s761 = sshll.u32 [#allocation8], 4
      %s762 = int_to_ptr.vmem [resolvable:$true] %s761
      %767 = dma.vmem_to_hbm [thread:$0]  %s762, 256, %s5, [#allocation4], 128, 128, 8
    $region37: #{tpu_custom_call.1} parent=1 // pred_fallthru
      _
    // Predicated region
    $region38: #{tpu_custom_call.1} parent=1 // pred_check
      _
    $region39: #{tpu_custom_call.1} parent=1 // pred_check_branch
      %769 = sbr.rel (0) target = $region41
    $region40: #{tpu_custom_call.1} parent=1 // pred_region
      %770 = dma.done [#allocation4], 256
    $region41: #{tpu_custom_call.1} parent=1 // pred_fallthru
      _
    %771 = vsyncpa [#allocation3], 1
    %772 = vsyncpa [#allocation6], 1
    %773 = vsyncpa [#allocation4], 1

</llo_original>
